<compile_context>
chip_gen: v5e
topology: v5e:2x2
jax: 0.10.0
libtpu: 0.0.40
codegen_flags: <defaults>
</compile_context>

<pallas_src>
import jax
import jax.numpy as jnp
from jax import lax
from jax.experimental import pallas as pl
from jax.experimental.pallas import tpu as pltpu


# ----------------------------- Pallas kernel -------------------------------

def _emb_tile_kernel(ids_ref, w_ref, table_ref, out_ref):
    """One tile of TILE_N output rows (static / dynamic / ad all handled).

    ids_ref:   (L, TILE_N) int32  global table-row id per (slot, row)
    w_ref:     (L, TILE_N) f32    per-slot weight: (l < len) / max(len, 1)
                                  (1.0 for single-valued static/ad rows, 0.0
                                  for padded slots / padded rows)
    table_ref: (V, E) f32         full embedding table, VMEM-resident
    out_ref:   (E, TILE_N) f32    transposed (lane-dense) output tile
    """
    l_max, tile_n = ids_ref.shape
    v_total, emb = table_ref.shape

    # counts[v, n] = sum_l  w[l, n] * [ids[l, n] == v]
    vs = lax.broadcasted_iota(jnp.int32, (v_total, tile_n), 0)
    counts = jnp.zeros((v_total, tile_n), jnp.float32)
    for l in range(l_max):                       # L is small & static: unroll
        ids_l = ids_ref[l:l + 1, :]              # (1, TILE_N)
        w_l = w_ref[l:l + 1, :]                  # (1, TILE_N)
        counts = counts + jnp.where(ids_l == vs, w_l, 0.0)

    # out[e, n] = sum_v table[v, e] * counts[v, n]
    # Exact f32 contraction on the VPU + cross-sublane reduce (E is tiny, so
    # the MXU would be idle anyway and this avoids any matmul precision drift
    # vs. the f32 reference).
    table = table_ref[...]                       # (V, E)
    rows = [jnp.sum(counts * table[:, e:e + 1], axis=0, keepdims=True)
            for e in range(emb)]
    out_ref[...] = jnp.concatenate(rows, axis=0)  # single dense (E, TILE_N) store


# ------------------------------ JAX wrapper --------------------------------

def _round_up(x, m):
    return (x + m - 1) // m * m


def fused_embedding(row_ids, lengths, table, *, tile_n=256):
    """row_ids: (N, L) int32 global table-row ids (slot l >= length is don't-care)
    lengths: (N,) int32 valid-length per row (1 for static/ad rows)
    table:   (V, E) f32 concatenated embedding table
    returns: (N, E) f32 masked-mean embeddings (sum / max(len, 1))."""
    n, l_max = row_ids.shape
    v_total, emb = table.shape

    # Lane-dense tiling over rows: TILE_N is a multiple of 128.
    tile_n = max(128, min(tile_n, _round_up(n, 128)))
    n_pad = _round_up(n, tile_n)
    num_tiles = n_pad // tile_n

    # Lane-dense transposed inputs; padded rows get weight 0 -> output 0.
    ids_t = jnp.zeros((l_max, n_pad), jnp.int32).at[:, :n].set(row_ids.T)
    len_p = jnp.zeros((n_pad,), jnp.int32).at[:n].set(lengths)
    inv_len = 1.0 / jnp.maximum(len_p, 1).astype(jnp.float32)
    w = jnp.where(jnp.arange(l_max)[:, None] < len_p[None, :],
                  inv_len[None, :], 0.0).astype(jnp.float32)       # (L, N_pad)

    # VMEM budget from the actual footprint (review: not a blanket 32 MiB).
    tile_in_bytes = _round_up(l_max, 8) * tile_n * 4
    vmem_bytes = (
        _round_up(v_total, 8) * _round_up(emb, 128) * 4            # resident table
        + 2 * 2 * tile_in_bytes                                    # ids + w, double-buffered
        + 2 * _round_up(emb, 8) * tile_n * 4                       # out, double-buffered
        + 4 * _round_up(v_total, 8) * tile_n * 4                   # counts / iota / temps
    )
    vmem_bytes = int(min(max(vmem_bytes + (4 << 20), 16 << 20), 48 << 20))

    out = pl.pallas_call(
        _emb_tile_kernel,
        out_shape=jax.ShapeDtypeStruct((emb, n_pad), jnp.float32),
        grid_spec=pltpu.PrefetchScalarGridSpec(
            num_scalar_prefetch=0,
            grid=(num_tiles,),
            in_specs=[
                pl.BlockSpec((l_max, tile_n), lambda i: (0, i)),
                pl.BlockSpec((l_max, tile_n), lambda i: (0, i)),
                pl.BlockSpec((v_total, emb), lambda i: (0, 0)),    # table: resident
            ],
            out_specs=pl.BlockSpec((emb, tile_n), lambda i: (0, i)),
        ),
        compiler_params=pltpu.CompilerParams(
            dimension_semantics=("parallel",),                     # shards tiles across TCs (v7x)
            vmem_limit_bytes=vmem_bytes,
        ),
    )(ids_t, w, table)
    return out[:, :n].T                                            # (N, E)


class EmbPallas:
    """JAX/Pallas port of the PyTorch `Emb` module.

    max_idxs: dict with keys 'static', 'ad', 'dynamic', each a list of
    per-field max indices (vocab size = max_idx + 1, as in Meta_Embedding).
    """

    def __init__(self, max_idxs, embedding_size=4, key=None):
        if key is None:
            key = jax.random.PRNGKey(0)
        self.embedding_size = embedding_size
        offsets = {}
        acc = 0
        for group in ("static", "dynamic", "ad"):
            offs = []
            for m in max_idxs[group]:
                offs.append(acc)
                acc += int(m) + 1
            offsets[group] = jnp.asarray(offs, jnp.int32)
        self.offsets = offsets
        self.vocab_total = acc
        # nn.Embedding default init: N(0, 1); one concatenated table for all fields.
        self.table = jax.random.normal(key, (acc, embedding_size), jnp.float32)

    def _build_schedule(self, static_ids, dynamic_ids, dynamic_lengths, ad_ids):
        b, f_st = static_ids.shape
        _, f_dy, l_max = dynamic_ids.shape
        _, f_ad = ad_ids.shape

        st = static_ids.astype(jnp.int32) + self.offsets["static"][None, :]           # (B, Fst)
        dy = dynamic_ids.astype(jnp.int32) + self.offsets["dynamic"][None, :, None]   # (B, Fdy, L)
        ad = ad_ids.astype(jnp.int32) + self.offsets["ad"][None, :]                   # (B, Fad)

        # Single-valued rows: id replicated across L (slots l >= 1 have weight 0,
        # and ids are only compared against an iota in-kernel, never dereferenced,
        # so padded slots cost nothing and can never go OOB).
        st_rows = jnp.broadcast_to(st[..., None], (b, f_st, l_max))
        ad_rows = jnp.broadcast_to(ad[..., None], (b, f_ad, l_max))

        cat_rows = jnp.concatenate([st_rows, dy], axis=1)            # (B, Fst+Fdy, L)
        row_ids = jnp.concatenate(
            [cat_rows.reshape(b * (f_st + f_dy), l_max),
             ad_rows.reshape(b * f_ad, l_max)], axis=0)              # (N, L)

        st_len = jnp.ones((b, f_st), jnp.int32)
        ad_len = jnp.ones((b, f_ad), jnp.int32)
        dy_len = dynamic_lengths.astype(jnp.int32)
        lengths = jnp.concatenate(
            [jnp.concatenate([st_len, dy_len], axis=1).reshape(-1),
             ad_len.reshape(-1)], axis=0)                            # (N,)
        return row_ids.astype(jnp.int32), lengths, b * (f_st + f_dy)

    def __call__(self, static_ids, dynamic_ids, dynamic_lengths, ad_ids):
        b, f_st = static_ids.shape
        _, f_dy, _ = dynamic_ids.shape
        _, f_ad = ad_ids.shape
        e = self.embedding_size

        row_ids, lengths, n_cat = self._build_schedule(
            static_ids, dynamic_ids, dynamic_lengths, ad_ids)
        flat = fused_embedding(row_ids, lengths, self.table)
        concat_embeddings = flat[:n_cat].reshape(b, f_st + f_dy, e)
        ad_emb = flat[n_cat:].reshape(b, f_ad, e)
        return concat_embeddings, ad_emb


# ----------------------------- pure-JAX reference ---------------------------

def _ref_st(ids, table, offsets):
    return jnp.take(table, ids + offsets[None, :], axis=0)


def _ref_dy(ids, lengths, table, offsets):
    emb = jnp.take(table, ids + offsets[None, :, None], axis=0)          # (B,F,L,E)
    l = ids.shape[-1]
    mask = (jnp.arange(l)[None, None, :] < lengths[:, :, None]).astype(jnp.float32)
    summed = (emb * mask[..., None]).sum(axis=2)
    denom = jnp.maximum(lengths, 1)[..., None].astype(jnp.float32)
    return summed / denom


# ---------------------------------- main ------------------------------------

if __name__ == "__main__":
    key = jax.random.PRNGKey(0)
    B, E, L = 4, 4, 5
    max_idxs = {
        "static": [10, 7, 5],     # 3 static fields
        "ad": [6, 4],             # 2 ad fields
        "dynamic": [9, 12],       # 2 dynamic multi-valued fields
    }

    k1, k2, k3, k4, kmod = jax.random.split(key, 5)
    static_ids = jnp.stack(
        [jax.random.randint(jax.random.fold_in(k1, i), (B,), 0, m + 1)
         for i, m in enumerate(max_idxs["static"])], axis=1).astype(jnp.int32)      # (B, 3)
    ad_ids = jnp.stack(
        [jax.random.randint(jax.random.fold_in(k2, i), (B,), 0, m + 1)
         for i, m in enumerate(max_idxs["ad"])], axis=1).astype(jnp.int32)          # (B, 2)
    dynamic_ids = jnp.stack(
        [jax.random.randint(jax.random.fold_in(k3, i), (B, L), 0, m + 1)
         for i, m in enumerate(max_idxs["dynamic"])], axis=1).astype(jnp.int32)     # (B, 2, L)
    dynamic_lengths = jax.random.randint(k4, (B, len(max_idxs["dynamic"])), 0, L + 1
                                         ).astype(jnp.int32)                        # (B, 2)

    model = EmbPallas(max_idxs, embedding_size=E, key=kmod)

    concat_emb, ad_emb = model(static_ids, dynamic_ids, dynamic_lengths, ad_ids)
    concat_emb = jax.block_until_ready(concat_emb)
    ad_emb = jax.block_until_ready(ad_emb)

    # correctness check against pure-JAX reference
    ref_static = _ref_st(static_ids, model.table, model.offsets["static"])
    ref_dynamic = _ref_dy(dynamic_ids, dynamic_lengths,
                          model.table, model.offsets["dynamic"])
    ref_concat = jnp.concatenate([ref_static, ref_dynamic], axis=1)
    ref_ad = _ref_st(ad_ids, model.table, model.offsets["ad"])

    assert concat_emb.shape == (B, 5, E) and ad_emb.shape == (B, 2, E)
    assert jnp.allclose(concat_emb, ref_concat, atol=1e-5)
    assert jnp.allclose(ad_emb, ref_ad, atol=1e-5)

    print("KERNEL_OK")
</pallas_src>

<mosaic_0001>
module attributes {stable_mosaic.version = 11 : i64} {
  func.func @_emb_tile_kernel(%arg0: i32, %arg1: memref<5x128xi32, #tpu.memory_space<vmem>>, %arg2: memref<5x128xf32, #tpu.memory_space<vmem>>, %arg3: memref<60x4xf32, #tpu.memory_space<vmem>>, %arg4: memref<4x128xf32, #tpu.memory_space<vmem>>) attributes {dimension_semantics = [#tpu.dimension_semantics<parallel>], iteration_bounds = array<i64: 1>, scalar_prefetch = 0 : i64, scratch_operands = 0 : i64, tpu.core_type = #tpu.core_type<tc>, window_params = [{transform_indices = @transform_0, window_bounds = array<i64: 5, 128>}, {transform_indices = @transform_1, window_bounds = array<i64: 5, 128>}, {pipeline_mode = #tpu.pipeline_mode<synchronous>, transform_indices = @transform_2, window_bounds = array<i64: 60, 4>}, {transform_indices = @transform_3, window_bounds = array<i64: 4, 128>}]} {
    %0 = tpu.iota {dimensions = array<i32: 0>} : vector<60x128xi32>
    %cst = arith.constant 0.000000e+00 : f32
    %1 = vector.broadcast %cst : f32 to vector<60x128xf32>
    %c0 = arith.constant 0 : index
    %c0_0 = arith.constant 0 : index
    %2 = vector.load %arg1[%c0, %c0_0] : memref<5x128xi32, #tpu.memory_space<vmem>>, vector<1x128xi32>
    %c0_1 = arith.constant 0 : index
    %c0_2 = arith.constant 0 : index
    %3 = vector.load %arg2[%c0_1, %c0_2] : memref<5x128xf32, #tpu.memory_space<vmem>>, vector<1x128xf32>
    %4 = vector.broadcast %2 : vector<1x128xi32> to vector<60x128xi32>
    %5 = arith.cmpi eq, %4, %0 : vector<60x128xi32>
    %cst_3 = arith.constant 0.000000e+00 : f32
    %6 = vector.shape_cast %3 : vector<1x128xf32> to vector<1x128xf32>
    %7 = vector.broadcast %6 : vector<1x128xf32> to vector<60x128xf32>
    %8 = vector.broadcast %cst_3 : f32 to vector<60x128xf32>
    %9 = arith.select %5, %7, %8 : vector<60x128xi1>, vector<60x128xf32>
    %10 = arith.addf %1, %9 : vector<60x128xf32>
    %c1 = arith.constant 1 : index
    %c0_4 = arith.constant 0 : index
    %11 = vector.load %arg1[%c1, %c0_4] : memref<5x128xi32, #tpu.memory_space<vmem>>, vector<1x128xi32>
    %c1_5 = arith.constant 1 : index
    %c0_6 = arith.constant 0 : index
    %12 = vector.load %arg2[%c1_5, %c0_6] : memref<5x128xf32, #tpu.memory_space<vmem>>, vector<1x128xf32>
    %13 = vector.broadcast %11 : vector<1x128xi32> to vector<60x128xi32>
    %14 = arith.cmpi eq, %13, %0 : vector<60x128xi32>
    %cst_7 = arith.constant 0.000000e+00 : f32
    %15 = vector.shape_cast %12 : vector<1x128xf32> to vector<1x128xf32>
    %16 = vector.broadcast %15 : vector<1x128xf32> to vector<60x128xf32>
    %17 = vector.broadcast %cst_7 : f32 to vector<60x128xf32>
    %18 = arith.select %14, %16, %17 : vector<60x128xi1>, vector<60x128xf32>
    %19 = arith.addf %10, %18 : vector<60x128xf32>
    %c2 = arith.constant 2 : index
    %c0_8 = arith.constant 0 : index
    %20 = vector.load %arg1[%c2, %c0_8] : memref<5x128xi32, #tpu.memory_space<vmem>>, vector<1x128xi32>
    %c2_9 = arith.constant 2 : index
    %c0_10 = arith.constant 0 : index
    %21 = vector.load %arg2[%c2_9, %c0_10] : memref<5x128xf32, #tpu.memory_space<vmem>>, vector<1x128xf32>
    %22 = vector.broadcast %20 : vector<1x128xi32> to vector<60x128xi32>
    %23 = arith.cmpi eq, %22, %0 : vector<60x128xi32>
    %cst_11 = arith.constant 0.000000e+00 : f32
    %24 = vector.shape_cast %21 : vector<1x128xf32> to vector<1x128xf32>
    %25 = vector.broadcast %24 : vector<1x128xf32> to vector<60x128xf32>
    %26 = vector.broadcast %cst_11 : f32 to vector<60x128xf32>
    %27 = arith.select %23, %25, %26 : vector<60x128xi1>, vector<60x128xf32>
    %28 = arith.addf %19, %27 : vector<60x128xf32>
    %c3 = arith.constant 3 : index
    %c0_12 = arith.constant 0 : index
    %29 = vector.load %arg1[%c3, %c0_12] : memref<5x128xi32, #tpu.memory_space<vmem>>, vector<1x128xi32>
    %c3_13 = arith.constant 3 : index
    %c0_14 = arith.constant 0 : index
    %30 = vector.load %arg2[%c3_13, %c0_14] : memref<5x128xf32, #tpu.memory_space<vmem>>, vector<1x128xf32>
    %31 = vector.broadcast %29 : vector<1x128xi32> to vector<60x128xi32>
    %32 = arith.cmpi eq, %31, %0 : vector<60x128xi32>
    %cst_15 = arith.constant 0.000000e+00 : f32
    %33 = vector.shape_cast %30 : vector<1x128xf32> to vector<1x128xf32>
    %34 = vector.broadcast %33 : vector<1x128xf32> to vector<60x128xf32>
    %35 = vector.broadcast %cst_15 : f32 to vector<60x128xf32>
    %36 = arith.select %32, %34, %35 : vector<60x128xi1>, vector<60x128xf32>
    %37 = arith.addf %28, %36 : vector<60x128xf32>
    %c4 = arith.constant 4 : index
    %c0_16 = arith.constant 0 : index
    %38 = vector.load %arg1[%c4, %c0_16] : memref<5x128xi32, #tpu.memory_space<vmem>>, vector<1x128xi32>
    %c4_17 = arith.constant 4 : index
    %c0_18 = arith.constant 0 : index
    %39 = vector.load %arg2[%c4_17, %c0_18] : memref<5x128xf32, #tpu.memory_space<vmem>>, vector<1x128xf32>
    %40 = vector.broadcast %38 : vector<1x128xi32> to vector<60x128xi32>
    %41 = arith.cmpi eq, %40, %0 : vector<60x128xi32>
    %cst_19 = arith.constant 0.000000e+00 : f32
    %42 = vector.shape_cast %39 : vector<1x128xf32> to vector<1x128xf32>
    %43 = vector.broadcast %42 : vector<1x128xf32> to vector<60x128xf32>
    %44 = vector.broadcast %cst_19 : f32 to vector<60x128xf32>
    %45 = arith.select %41, %43, %44 : vector<60x128xi1>, vector<60x128xf32>
    %46 = arith.addf %37, %45 : vector<60x128xf32>
    %c0_20 = arith.constant 0 : index
    %c0_21 = arith.constant 0 : index
    %47 = vector.load %arg3[%c0_20, %c0_21] : memref<60x4xf32, #tpu.memory_space<vmem>>, vector<60x4xf32>
    %48 = vector.extract_strided_slice %47 {offsets = [0, 0], sizes = [60, 1], strides = [1, 1]} : vector<60x4xf32> to vector<60x1xf32>
    %49 = vector.broadcast %48 : vector<60x1xf32> to vector<60x128xf32>
    %50 = arith.mulf %46, %49 : vector<60x128xf32>
    %cst_22 = arith.constant dense<0.000000e+00> : vector<128xf32>
    %51 = vector.multi_reduction <add>, %50, %cst_22 [0] : vector<60x128xf32> to vector<128xf32>
    %52 = vector.shape_cast %51 : vector<128xf32> to vector<1x128xf32>
    %53 = vector.extract_strided_slice %47 {offsets = [0, 1], sizes = [60, 1], strides = [1, 1]} : vector<60x4xf32> to vector<60x1xf32>
    %54 = vector.broadcast %53 : vector<60x1xf32> to vector<60x128xf32>
    %55 = arith.mulf %46, %54 : vector<60x128xf32>
    %cst_23 = arith.constant dense<0.000000e+00> : vector<128xf32>
    %56 = vector.multi_reduction <add>, %55, %cst_23 [0] : vector<60x128xf32> to vector<128xf32>
    %57 = vector.shape_cast %56 : vector<128xf32> to vector<1x128xf32>
    %58 = vector.extract_strided_slice %47 {offsets = [0, 2], sizes = [60, 1], strides = [1, 1]} : vector<60x4xf32> to vector<60x1xf32>
    %59 = vector.broadcast %58 : vector<60x1xf32> to vector<60x128xf32>
    %60 = arith.mulf %46, %59 : vector<60x128xf32>
    %cst_24 = arith.constant dense<0.000000e+00> : vector<128xf32>
    %61 = vector.multi_reduction <add>, %60, %cst_24 [0] : vector<60x128xf32> to vector<128xf32>
    %62 = vector.shape_cast %61 : vector<128xf32> to vector<1x128xf32>
    %63 = vector.extract_strided_slice %47 {offsets = [0, 3], sizes = [60, 1], strides = [1, 1]} : vector<60x4xf32> to vector<60x1xf32>
    %64 = vector.broadcast %63 : vector<60x1xf32> to vector<60x128xf32>
    %65 = arith.mulf %46, %64 : vector<60x128xf32>
    %cst_25 = arith.constant dense<0.000000e+00> : vector<128xf32>
    %66 = vector.multi_reduction <add>, %65, %cst_25 [0] : vector<60x128xf32> to vector<128xf32>
    %67 = vector.shape_cast %66 : vector<128xf32> to vector<1x128xf32>
    %68 = tpu.concatenate %52, %57, %62, %67 in 0 : vector<1x128xf32>, vector<1x128xf32>, vector<1x128xf32>, vector<1x128xf32> -> vector<4x128xf32>
    %c0_26 = arith.constant 0 : index
    %c0_27 = arith.constant 0 : index
    %69 = vector.load %arg4[%c0_26, %c0_27] : memref<4x128xf32, #tpu.memory_space<vmem>>, vector<4x128xf32>
    tpu.vector_store %arg4[%c0_26, %c0_27], %68 {strides = array<i32>} : memref<4x128xf32, #tpu.memory_space<vmem>>, vector<4x128xf32>,
    return
  }
  func.func @transform_0(%arg0: i32) -> (i32, i32) {
    %c0_i32 = arith.constant 0 : i32
    %c0_i32_0 = arith.constant 0 : i32
    return %c0_i32, %arg0 : i32, i32
  }
  func.func @transform_1(%arg0: i32) -> (i32, i32) {
    %c0_i32 = arith.constant 0 : i32
    %c0_i32_0 = arith.constant 0 : i32
    return %c0_i32, %arg0 : i32, i32
  }
  func.func @transform_2(%arg0: i32) -> (i32, i32) {
    %c0_i32 = arith.constant 0 : i32
    %c0_i32_0 = arith.constant 0 : i32
    %c0_i32_1 = arith.constant 0 : i32
    return %c0_i32, %c0_i32_0 : i32, i32
  }
  func.func @transform_3(%arg0: i32) -> (i32, i32) {
    %c0_i32 = arith.constant 0 : i32
    %c0_i32_0 = arith.constant 0 : i32
    return %c0_i32, %arg0 : i32, i32
  }
}

</mosaic_0001>

<llo_original>
// kernel: tpu_custom_call.1
$region0: #{tpu_custom_call.1}
  #allocation0 [shape = 'u32[]', space=smem, size = 0x4, offset = 0x4, fixed_abs, tag = 'smem constant byte address 0x4 - core index']
  #allocation1 [shape = 'u32[72,128]{1,0:T(1,128)}', space=vmem, size = 0x9000, scoped, tag = 'internal scratch']
  %s0 = inlined_call_operand.vmem [shape: s32[5,128], index: 0, kind: input, shape index: {}]
  %s1 = inlined_call_operand.vmem [shape: f32[5,128], index: 1, kind: input, shape index: {}]
  %s2 = inlined_call_operand.vmem [shape: f32[60,4], index: 2, kind: input, shape index: {}]
  %s3 = inlined_call_operand.hbm [shape: f32[4,128], index: 3, kind: output, shape index: {}]
  %s4 = sld [smem:[#allocation0]]
  $region22: #{tpu_custom_call.1} parent=0
    _
  %s6 = ssub.s32 1, %s4
  %s7 = scalar_select 0, %s6, %s4
  $region1: #{tpu_custom_call.1} parent=0
    #allocation2 [shape = 'u8[2048]{0}', space=vmem, size = 0x800, scoped, tag = 'output window, operand 0, single buffered']
    #allocation3 [shape = 's32[1]{0}', space=sflag, size = 0x4, scoped, tag = 'scoped memory for tpu_custom_call.1']
    %8 = vsyncpa [#allocation3], 0
    // Predicated region
    $region2: #{tpu_custom_call.1} parent=1 // pred_check
      _
    $region3: #{tpu_custom_call.1} parent=1 // pred_check_branch
      %10 = sbr.rel (0) target = $region5
    $region4: #{tpu_custom_call.1} parent=1 // pred_region
      _
    $region5: #{tpu_custom_call.1} parent=1 // pred_fallthru
      _
    // Predicated region
    $region6: #{tpu_custom_call.1} parent=1 // pred_check
      _
    $region7: #{tpu_custom_call.1} parent=1 // pred_check_branch
      %12 = sbr.rel (0) target = $region9
    $region8: #{tpu_custom_call.1} parent=1 // pred_region
      _
    $region9: #{tpu_custom_call.1} parent=1 // pred_fallthru
      _
    // Predicated region
    $region10: #{tpu_custom_call.1} parent=1 // pred_check
      _
    $region11: #{tpu_custom_call.1} parent=1 // pred_check_branch
      %14 = sbr.rel (0) target = $region13
    $region12: #{tpu_custom_call.1} parent=1 // pred_region
      _
    $region13: #{tpu_custom_call.1} parent=1 // pred_fallthru
      _
    %v15 = vlaneseq
    %v16 = vshrl.u32 %v15, 7
    %v17 = vadd.s32 %v16, 8
    %v18 = vadd.s32 %v16, 16
    %v19 = vadd.s32 %v16, 24
    %v20 = vadd.s32 %v16, 32
    %v21 = vadd.s32 %v16, 40
    %v22 = vadd.s32 %v16, 48
    %v23 = vadd.s32 %v16, 56
    %v24 = vld [vmem:[%s0] sm:$0x1]
    %v25 = vld [vmem:[%s1] sm:$0x1]
    %v26 = vperm.slane %v24, 0
    %vm27 = vcmp.eq.s32.totalorder %v26, %v16
    %vm28 = vcmp.eq.s32.totalorder %v26, %v17
    %vm29 = vcmp.eq.s32.totalorder %v26, %v18
    %vm30 = vcmp.eq.s32.totalorder %v26, %v19
    %vm31 = vcmp.eq.s32.totalorder %v26, %v20
    %vm32 = vcmp.eq.s32.totalorder %v26, %v21
    %vm33 = vcmp.eq.s32.totalorder %v26, %v22
    %vm34 = vcmp.eq.s32.totalorder %v26, %v23
    %v35 = vperm.slane %v25, 0
    %v36 = vsel %vm27, %v35, 0.0
    %v37 = vsel %vm28, %v35, 0.0
    %v38 = vsel %vm29, %v35, 0.0
    %v39 = vsel %vm30, %v35, 0.0
    %v40 = vsel %vm31, %v35, 0.0
    %v41 = vsel %vm32, %v35, 0.0
    %v42 = vsel %vm33, %v35, 0.0
    %v43 = vsel %vm34, %v35, 0.0
    %v44 = vadd.f32 %v36, 0.0
    %v45 = vadd.f32 %v37, 0.0
    %v46 = vadd.f32 %v38, 0.0
    %v47 = vadd.f32 %v39, 0.0
    %v48 = vadd.f32 %v40, 0.0
    %v49 = vadd.f32 %v41, 0.0
    %v50 = vadd.f32 %v42, 0.0
    %v51 = vadd.f32 %v43, 0.0
    %v52 = vld [vmem:[%s0 + $0x1] sm:$0x1]
    %v53 = vld [vmem:[%s1 + $0x1] sm:$0x1]
    %v54 = vperm.slane %v52, 0
    %vm55 = vcmp.eq.s32.totalorder %v54, %v16
    %vm56 = vcmp.eq.s32.totalorder %v54, %v17
    %vm57 = vcmp.eq.s32.totalorder %v54, %v18
    %vm58 = vcmp.eq.s32.totalorder %v54, %v19
    %vm59 = vcmp.eq.s32.totalorder %v54, %v20
    %vm60 = vcmp.eq.s32.totalorder %v54, %v21
    %vm61 = vcmp.eq.s32.totalorder %v54, %v22
    %vm62 = vcmp.eq.s32.totalorder %v54, %v23
    %v63 = vperm.slane %v53, 0
    %v64 = vsel %vm55, %v63, 0.0
    %v65 = vsel %vm56, %v63, 0.0
    %v66 = vsel %vm57, %v63, 0.0
    %v67 = vsel %vm58, %v63, 0.0
    %v68 = vsel %vm59, %v63, 0.0
    %v69 = vsel %vm60, %v63, 0.0
    %v70 = vsel %vm61, %v63, 0.0
    %v71 = vsel %vm62, %v63, 0.0
    %v72 = vadd.f32 %v44, %v64
    %v73 = vadd.f32 %v45, %v65
    %v74 = vadd.f32 %v46, %v66
    %v75 = vadd.f32 %v47, %v67
    %v76 = vadd.f32 %v48, %v68
    %v77 = vadd.f32 %v49, %v69
    %v78 = vadd.f32 %v50, %v70
    %v79 = vadd.f32 %v51, %v71
    %v80 = vld [vmem:[%s0 + $0x2] sm:$0x1]
    %v81 = vld [vmem:[%s1 + $0x2] sm:$0x1]
    %v82 = vperm.slane %v80, 0
    %vm83 = vcmp.eq.s32.totalorder %v82, %v16
    %vm84 = vcmp.eq.s32.totalorder %v82, %v17
    %vm85 = vcmp.eq.s32.totalorder %v82, %v18
    %vm86 = vcmp.eq.s32.totalorder %v82, %v19
    %vm87 = vcmp.eq.s32.totalorder %v82, %v20
    %vm88 = vcmp.eq.s32.totalorder %v82, %v21
    %vm89 = vcmp.eq.s32.totalorder %v82, %v22
    %vm90 = vcmp.eq.s32.totalorder %v82, %v23
    %v91 = vperm.slane %v81, 0
    %v92 = vsel %vm83, %v91, 0.0
    %v93 = vsel %vm84, %v91, 0.0
    %v94 = vsel %vm85, %v91, 0.0
    %v95 = vsel %vm86, %v91, 0.0
    %v96 = vsel %vm87, %v91, 0.0
    %v97 = vsel %vm88, %v91, 0.0
    %v98 = vsel %vm89, %v91, 0.0
    %v99 = vsel %vm90, %v91, 0.0
    %v100 = vadd.f32 %v72, %v92
    %v101 = vadd.f32 %v73, %v93
    %v102 = vadd.f32 %v74, %v94
    %v103 = vadd.f32 %v75, %v95
    %v104 = vadd.f32 %v76, %v96
    %v105 = vadd.f32 %v77, %v97
    %v106 = vadd.f32 %v78, %v98
    %v107 = vadd.f32 %v79, %v99
    %v108 = vld [vmem:[%s0 + $0x3] sm:$0x1]
    %v109 = vld [vmem:[%s1 + $0x3] sm:$0x1]
    %v110 = vperm.slane %v108, 0
    %vm111 = vcmp.eq.s32.totalorder %v110, %v16
    %vm112 = vcmp.eq.s32.totalorder %v110, %v17
    %vm113 = vcmp.eq.s32.totalorder %v110, %v18
    %vm114 = vcmp.eq.s32.totalorder %v110, %v19
    %vm115 = vcmp.eq.s32.totalorder %v110, %v20
    %vm116 = vcmp.eq.s32.totalorder %v110, %v21
    %vm117 = vcmp.eq.s32.totalorder %v110, %v22
    %vm118 = vcmp.eq.s32.totalorder %v110, %v23
    %v119 = vperm.slane %v109, 0
    %v120 = vsel %vm111, %v119, 0.0
    %v121 = vsel %vm112, %v119, 0.0
    %v122 = vsel %vm113, %v119, 0.0
    %v123 = vsel %vm114, %v119, 0.0
    %v124 = vsel %vm115, %v119, 0.0
    %v125 = vsel %vm116, %v119, 0.0
    %v126 = vsel %vm117, %v119, 0.0
    %v127 = vsel %vm118, %v119, 0.0
    %v128 = vadd.f32 %v100, %v120
    %v129 = vadd.f32 %v101, %v121
    %v130 = vadd.f32 %v102, %v122
    %v131 = vadd.f32 %v103, %v123
    %v132 = vadd.f32 %v104, %v124
    %v133 = vadd.f32 %v105, %v125
    %v134 = vadd.f32 %v106, %v126
    %v135 = vadd.f32 %v107, %v127
    %v136 = vld [vmem:[%s0 + $0x4] sm:$0x1]
    %v137 = vld [vmem:[%s1 + $0x4] sm:$0x1]
    %v138 = vperm.slane %v136, 0
    %vm139 = vcmp.eq.s32.totalorder %v138, %v16
    %vm140 = vcmp.eq.s32.totalorder %v138, %v17
    %vm141 = vcmp.eq.s32.totalorder %v138, %v18
    %vm142 = vcmp.eq.s32.totalorder %v138, %v19
    %vm143 = vcmp.eq.s32.totalorder %v138, %v20
    %vm144 = vcmp.eq.s32.totalorder %v138, %v21
    %vm145 = vcmp.eq.s32.totalorder %v138, %v22
    %vm146 = vcmp.eq.s32.totalorder %v138, %v23
    %v147 = vperm.slane %v137, 0
    %v148 = vsel %vm139, %v147, 0.0
    %v149 = vsel %vm140, %v147, 0.0
    %v150 = vsel %vm141, %v147, 0.0
    %v151 = vsel %vm142, %v147, 0.0
    %v152 = vsel %vm143, %v147, 0.0
    %v153 = vsel %vm144, %v147, 0.0
    %v154 = vsel %vm145, %v147, 0.0
    %v155 = vsel %vm146, %v147, 0.0
    %v156 = vadd.f32 %v128, %v148
    %v157 = vadd.f32 %v129, %v149
    %v158 = vadd.f32 %v130, %v150
    %v159 = vadd.f32 %v131, %v151
    %v160 = vadd.f32 %v132, %v152
    %v161 = vadd.f32 %v133, %v153
    %v162 = vadd.f32 %v134, %v154
    %v163 = vadd.f32 %v135, %v155
    %v164 = vld [vmem:[%s2] sm:$0xff]
    %v165 = vld [vmem:[%s2 + $0x8] sm:$0xff]
    %v166 = vld [vmem:[%s2 + $0x10] sm:$0xff]
    %v167 = vld [vmem:[%s2 + $0x18] sm:$0xff]
    %v168 = vld [vmem:[%s2 + $0x20] sm:$0xff]
    %v169 = vld [vmem:[%s2 + $0x28] sm:$0xff]
    %v170 = vld [vmem:[%s2 + $0x30] sm:$0xff]
    %v171 = vld [vmem:[%s2 + $0x38] sm:$0xf]
    %173 = vset.pattern.permute.xlu0 0
    %174 = vperm.xlu0 %173, %v164
    %v175 = vpop.permute.xlu0 %174
    %178 = vset.pattern.permute.xlu0 0
    %179 = vperm.xlu0 %178, %v165
    %v180 = vpop.permute.xlu0 %179
    %183 = vset.pattern.permute.xlu0 0
    %184 = vperm.xlu0 %183, %v166
    %v185 = vpop.permute.xlu0 %184
    %188 = vset.pattern.permute.xlu0 0
    %189 = vperm.xlu0 %188, %v167
    %v190 = vpop.permute.xlu0 %189
    %193 = vset.pattern.permute.xlu0 0
    %194 = vperm.xlu0 %193, %v168
    %v195 = vpop.permute.xlu0 %194
    %198 = vset.pattern.permute.xlu0 0
    %199 = vperm.xlu0 %198, %v169
    %v200 = vpop.permute.xlu0 %199
    %203 = vset.pattern.permute.xlu0 0
    %204 = vperm.xlu0 %203, %v170
    %v205 = vpop.permute.xlu0 %204
    %208 = vset.pattern.permute.xlu0 0
    %209 = vperm.xlu0 %208, %v171
    %v210 = vpop.permute.xlu0 %209
    %v212 = vmul.f32 %v156, %v175
    %v213 = vmul.f32 %v157, %v180
    %v214 = vmul.f32 %v158, %v185
    %v215 = vmul.f32 %v159, %v190
    %v216 = vmul.f32 %v160, %v195
    %v217 = vmul.f32 %v161, %v200
    %v218 = vmul.f32 %v162, %v205
    %v219 = vmul.f32 %v163, %v210
    %v220 = vadd.f32 %v212, %v213
    %v221 = vadd.f32 %v220, %v214
    %v222 = vadd.f32 %v221, %v215
    %v223 = vadd.f32 %v222, %v216
    %v224 = vadd.f32 %v223, %v217
    %v225 = vadd.f32 %v224, %v218
    %vm226 = vcmask 1043456
    %v227 = vsel %vm226, %v219, 0.0
    %v228 = vadd.f32 %v225, %v227
    %v229 = vrot.slane %v228, 4
    %v230 = vadd.f32 %v228, %v229
    %v231 = vrot.slane %v230, 2
    %v232 = vadd.f32 %v230, %v231
    %v233 = vrot.slane %v232, 1
    %v234 = vadd.f32 %v232, %v233
    %235 = vset.pattern.permute.xlu0 1
    %236 = vperm.xlu0 %235, %v164
    %v237 = vpop.permute.xlu0 %236
    %239 = vset.pattern.permute.xlu0 1
    %240 = vperm.xlu0 %239, %v165
    %v241 = vpop.permute.xlu0 %240
    %243 = vset.pattern.permute.xlu0 1
    %244 = vperm.xlu0 %243, %v166
    %v245 = vpop.permute.xlu0 %244
    %247 = vset.pattern.permute.xlu0 1
    %248 = vperm.xlu0 %247, %v167
    %v249 = vpop.permute.xlu0 %248
    %251 = vset.pattern.permute.xlu0 1
    %252 = vperm.xlu0 %251, %v168
    %v253 = vpop.permute.xlu0 %252
    %255 = vset.pattern.permute.xlu0 1
    %256 = vperm.xlu0 %255, %v169
    %v257 = vpop.permute.xlu0 %256
    %259 = vset.pattern.permute.xlu0 1
    %260 = vperm.xlu0 %259, %v170
    %v261 = vpop.permute.xlu0 %260
    %263 = vset.pattern.permute.xlu0 1
    %264 = vperm.xlu0 %263, %v171
    %v265 = vpop.permute.xlu0 %264
    %v267 = vmul.f32 %v156, %v237
    %v268 = vmul.f32 %v157, %v241
    %v269 = vmul.f32 %v158, %v245
    %v270 = vmul.f32 %v159, %v249
    %v271 = vmul.f32 %v160, %v253
    %v272 = vmul.f32 %v161, %v257
    %v273 = vmul.f32 %v162, %v261
    %v274 = vmul.f32 %v163, %v265
    %v275 = vadd.f32 %v267, %v268
    %v276 = vadd.f32 %v275, %v269
    %v277 = vadd.f32 %v276, %v270
    %v278 = vadd.f32 %v277, %v271
    %v279 = vadd.f32 %v278, %v272
    %v280 = vadd.f32 %v279, %v273
    %v281 = vsel %vm226, %v274, 0.0
    %v282 = vadd.f32 %v280, %v281
    %v283 = vrot.slane %v282, 4
    %v284 = vadd.f32 %v282, %v283
    %v285 = vrot.slane %v284, 2
    %v286 = vadd.f32 %v284, %v285
    %v287 = vrot.slane %v286, 1
    %v288 = vadd.f32 %v286, %v287
    %289 = vset.pattern.permute.xlu0 2
    %290 = vperm.xlu0 %289, %v164
    %v291 = vpop.permute.xlu0 %290
    %293 = vset.pattern.permute.xlu0 2
    %294 = vperm.xlu0 %293, %v165
    %v295 = vpop.permute.xlu0 %294
    %297 = vset.pattern.permute.xlu0 2
    %298 = vperm.xlu0 %297, %v166
    %v299 = vpop.permute.xlu0 %298
    %301 = vset.pattern.permute.xlu0 2
    %302 = vperm.xlu0 %301, %v167
    %v303 = vpop.permute.xlu0 %302
    %305 = vset.pattern.permute.xlu0 2
    %306 = vperm.xlu0 %305, %v168
    %v307 = vpop.permute.xlu0 %306
    %309 = vset.pattern.permute.xlu0 2
    %310 = vperm.xlu0 %309, %v169
    %v311 = vpop.permute.xlu0 %310
    %313 = vset.pattern.permute.xlu0 2
    %314 = vperm.xlu0 %313, %v170
    %v315 = vpop.permute.xlu0 %314
    %317 = vset.pattern.permute.xlu0 2
    %318 = vperm.xlu0 %317, %v171
    %v319 = vpop.permute.xlu0 %318
    %v321 = vmul.f32 %v156, %v291
    %v322 = vmul.f32 %v157, %v295
    %v323 = vmul.f32 %v158, %v299
    %v324 = vmul.f32 %v159, %v303
    %v325 = vmul.f32 %v160, %v307
    %v326 = vmul.f32 %v161, %v311
    %v327 = vmul.f32 %v162, %v315
    %v328 = vmul.f32 %v163, %v319
    %v329 = vadd.f32 %v321, %v322
    %v330 = vadd.f32 %v329, %v323
    %v331 = vadd.f32 %v330, %v324
    %v332 = vadd.f32 %v331, %v325
    %v333 = vadd.f32 %v332, %v326
    %v334 = vadd.f32 %v333, %v327
    %v335 = vsel %vm226, %v328, 0.0
    %v336 = vadd.f32 %v334, %v335
    %v337 = vrot.slane %v336, 4
    %v338 = vadd.f32 %v336, %v337
    %v339 = vrot.slane %v338, 2
    %v340 = vadd.f32 %v338, %v339
    %v341 = vrot.slane %v340, 1
    %v342 = vadd.f32 %v340, %v341
    %343 = vset.pattern.permute.xlu0 3
    %344 = vperm.xlu0 %343, %v164
    %v345 = vpop.permute.xlu0 %344
    %347 = vset.pattern.permute.xlu0 3
    %348 = vperm.xlu0 %347, %v165
    %v349 = vpop.permute.xlu0 %348
    %351 = vset.pattern.permute.xlu0 3
    %352 = vperm.xlu0 %351, %v166
    %v353 = vpop.permute.xlu0 %352
    %355 = vset.pattern.permute.xlu0 3
    %356 = vperm.xlu0 %355, %v167
    %v357 = vpop.permute.xlu0 %356
    %359 = vset.pattern.permute.xlu0 3
    %360 = vperm.xlu0 %359, %v168
    %v361 = vpop.permute.xlu0 %360
    %363 = vset.pattern.permute.xlu0 3
    %364 = vperm.xlu0 %363, %v169
    %v365 = vpop.permute.xlu0 %364
    %367 = vset.pattern.permute.xlu0 3
    %368 = vperm.xlu0 %367, %v170
    %v369 = vpop.permute.xlu0 %368
    %371 = vset.pattern.permute.xlu0 3
    %372 = vperm.xlu0 %371, %v171
    %v373 = vpop.permute.xlu0 %372
    %v375 = vmul.f32 %v156, %v345
    %v376 = vmul.f32 %v157, %v349
    %v377 = vmul.f32 %v158, %v353
    %v378 = vmul.f32 %v159, %v357
    %v379 = vmul.f32 %v160, %v361
    %v380 = vmul.f32 %v161, %v365
    %v381 = vmul.f32 %v162, %v369
    %v382 = vmul.f32 %v163, %v373
    %v383 = vadd.f32 %v375, %v376
    %v384 = vadd.f32 %v383, %v377
    %v385 = vadd.f32 %v384, %v378
    %v386 = vadd.f32 %v385, %v379
    %v387 = vadd.f32 %v386, %v380
    %v388 = vadd.f32 %v387, %v381
    %v389 = vsel %vm226, %v382, 0.0
    %v390 = vadd.f32 %v388, %v389
    %v391 = vrot.slane %v390, 4
    %v392 = vadd.f32 %v390, %v391
    %v393 = vrot.slane %v392, 2
    %v394 = vadd.f32 %v392, %v393
    %v395 = vrot.slane %v394, 1
    %v396 = vadd.f32 %v394, %v395
    %vm397 = vcmask 1040384
    %v398 = vsel %vm397, %v234, %v288
    %vm399 = vcmask 1041408
    %v400 = vsel %vm399, %v398, %v342
    %vm401 = vcmask 1042432
    %v402 = vsel %vm401, %v400, %v396
    %403 = vst [vmem:[#allocation2] sm:$0xf] %v402
    // Predicated region
    $region14: #{tpu_custom_call.1} parent=1 // pred_check
      _
    $region15: #{tpu_custom_call.1} parent=1 // pred_check_branch
      %405 = sbr.rel (0) target = $region17
    $region16: #{tpu_custom_call.1} parent=1 // pred_region
      %407 = vsyncadd [#allocation3], 0
      %s409 = sshll.u32 [#allocation2], 4
      %s410 = int_to_ptr.vmem [resolvable:$true] %s409
      %s411 = sshll.u32 %s3, 4
      %s412 = int_to_ptr.hbm [resolvable:$true] %s411
      %414 = dma.vmem_to_hbm [thread:$0]  %s410, 64, %s412, [#allocation3]
    $region17: #{tpu_custom_call.1} parent=1 // pred_fallthru
      _
    // Predicated region
    $region18: #{tpu_custom_call.1} parent=1 // pred_check
      _
    $region19: #{tpu_custom_call.1} parent=1 // pred_check_branch
      %416 = sbr.rel (0) target = $region21
    $region20: #{tpu_custom_call.1} parent=1 // pred_region
      %418 = dma.done [#allocation3], 64
    $region21: #{tpu_custom_call.1} parent=1 // pred_fallthru
      _
    %419 = vsyncpa [#allocation3], 1

</llo_original>
